<compile_context>
chip_gen: v7x
topology: tpu7x:2x2x1
jax: 0.10.0
libtpu: 0.0.40
codegen_flags: <defaults>
</compile_context>

<pallas_src>
import functools

import jax
import jax.numpy as jnp
from jax.experimental import pallas as pl
from jax.experimental.pallas import tpu as pltpu

LANE = 128


def _round_up(x, m):
    return ((x + m - 1) // m) * m


# ---------------- fused kernel: whole GraphEmbbeding in one invocation ----------------

def graph_embedding_kernel(p_ref, feat_ref, ws_ref, bs_ref, out_ref, *, num_layers):
    p = p_ref[...]                       # bf16 [Np, Np] : P = sum_{j=0..k} M^j (precomputed)
    h = feat_ref[...]                    # bf16 [Np, Fp] : current-layer features
    rst = None
    for l in range(num_layers):          # static, unrolled; weights stay VMEM-resident
        # propagation (all k hops folded into P) -- f32 accumulation on the MXU
        ph = jnp.dot(p, h, preferred_element_type=jnp.float32)               # [Np, Fp]
        # hoisted weight matmul + (k+1)-prescaled bias + relu (f32 epilogue on the VPU)
        rst = jnp.dot(ph.astype(jnp.bfloat16), ws_ref[l],
                      preferred_element_type=jnp.float32) + bs_ref[l]        # [Np, Fp]
        rst = jnp.maximum(rst, 0.0)
        h = rst.astype(jnp.bfloat16)     # bf16 operand for the next layer (padded cols stay 0)
    out_ref[...] = rst


def _fused_graph_embedding(p_bf16, feat_bf16, ws, bs, *, num_layers):
    n_pad, f_pad = feat_bf16.shape

    kernel = functools.partial(graph_embedding_kernel, num_layers=num_layers)

    flops = int(num_layers * (2 * n_pad * n_pad * f_pad + 2 * n_pad * f_pad * f_pad))
    bytes_accessed = int(p_bf16.size * 2 + feat_bf16.size * 2 + ws.size * 2
                         + bs.size * 4 + n_pad * f_pad * 4)

    # Actual residency (no grid -> no double buffering): P + feat + ws + bs + out.
    resident = (p_bf16.size * 2 + feat_bf16.size * 2 + ws.size * 2
                + bs.size * 4 + n_pad * f_pad * 4)
    # Generous margin for compiler temporaries; clamp to stay within v7x's 64 MiB VMEM.
    vmem_limit = int(min(max(2 * resident + (4 << 20), 16 << 20), 48 << 20))

    return pl.pallas_call(
        kernel,
        out_shape=jax.ShapeDtypeStruct((n_pad, f_pad), jnp.float32),
        in_specs=[
            pl.BlockSpec(memory_space=pltpu.MemorySpace.VMEM),  # P          [Np, Np] bf16
            pl.BlockSpec(memory_space=pltpu.MemorySpace.VMEM),  # features   [Np, Fp] bf16
            pl.BlockSpec(memory_space=pltpu.MemorySpace.VMEM),  # weights    [L, Fp, Fp] bf16
            pl.BlockSpec(memory_space=pltpu.MemorySpace.VMEM),  # biases     [L, 1, Fp] f32
        ],
        out_specs=pl.BlockSpec(memory_space=pltpu.MemorySpace.VMEM),
        compiler_params=pltpu.CompilerParams(vmem_limit_bytes=vmem_limit),
        cost_estimate=pl.CostEstimate(flops=flops, transcendentals=0,
                                      bytes_accessed=bytes_accessed),
    )(p_bf16, feat_bf16, ws, bs)


# ---------------- parameter init (deterministic, in-script) ----------------

def xavier_uniform(key, shape):
    fan_in, fan_out = shape
    bound = (6.0 / (fan_in + fan_out)) ** 0.5
    return jax.random.uniform(key, shape, jnp.float32, -bound, bound)


def init_graph_embedding_params(key, in_feats, hid_feats, out_feats,
                                num_layers, method='sum', k=2):
    """Only weights[0]/biases[0] per layer are used in forward (as in PyTorch)."""
    params = []
    f_in = in_feats
    for i in range(num_layers):
        f_out = out_feats if i == num_layers - 1 else hid_feats
        key, wkey = jax.random.split(key)
        w = xavier_uniform(wkey, (f_in, f_out))
        b = jnp.zeros((f_out,), jnp.float32)
        params.append((w, b))
        f_in = f_out * (k + 1) if method == 'cat' else f_out
    return params


# ---------------- GraphEmbbeding forward (JAX glue around the kernel) ----------------

def graph_embedding_forward(adj, feat, params, k, *, adj_is_symmetric=True):
    """adj: dense [N, N] with adj[u, v] = 1.0 for edge u -> v."""
    n, in_feats = feat.shape
    out_feats = params[-1][0].shape[1]
    num_layers = len(params)

    # Lane-dense padding for BOTH the node and feature dims (full vld/vst, full MXU passes).
    n_pad = _round_up(n, LANE)
    f_pad = _round_up(max([in_feats] + [w.shape[1] for (w, _) in params]), LANE)

    # Degree normalization + k-hop propagation matrix, all precomputed ONCE in f32:
    #   M = D^{-1/2} A^T D^{-1/2},  P = sum_{j=0..k} M^j
    adj = adj.astype(jnp.float32)
    degs = jnp.maximum(jnp.sum(adj, axis=1), 1.0)         # out-degrees, clamp(min=1)
    norm = degs ** -0.5
    a_t = adj if adj_is_symmetric else adj.T              # in-edge aggregation needs A^T
    m = norm[:, None] * a_t * norm[None, :]
    p = jnp.eye(n, dtype=jnp.float32)
    mp = jnp.eye(n, dtype=jnp.float32)
    for _ in range(k):
        mp = m @ mp
        p = p + mp

    # Zero-pad everything (padded P rows/cols are zero, so padded rows never contaminate
    # real rows; padded feature cols stay exactly zero through every layer).
    p_bf16 = jnp.pad(p, ((0, n_pad - n), (0, n_pad - n))).astype(jnp.bfloat16)
    feat_bf16 = jnp.pad(feat.astype(jnp.float32),
                        ((0, n_pad - n), (0, f_pad - in_feats))).astype(jnp.bfloat16)
    ws = jnp.stack([
        jnp.pad(w.astype(jnp.float32),
                ((0, f_pad - w.shape[0]), (0, f_pad - w.shape[1])))
        for (w, _) in params]).astype(jnp.bfloat16)                       # [L, Fp, Fp] bf16
    bs = jnp.stack([
        jnp.pad((k + 1.0) * b.astype(jnp.float32),
                (0, f_pad - b.shape[0])).reshape(1, f_pad)
        for (_, b) in params])                                            # [L, 1, Fp] f32

    out_padded = _fused_graph_embedding(p_bf16, feat_bf16, ws, bs,
                                        num_layers=num_layers)
    return out_padded[:n, :out_feats]


# ---------------- pure-JAX f32 reference (validation only) ----------------

def graph_embedding_reference(adj, feat, params, k):
    adj = adj.astype(jnp.float32)
    degs = jnp.maximum(jnp.sum(adj, axis=1), 1.0)
    norm = degs ** -0.5
    m = norm[:, None] * adj.T * norm[None, :]
    for (w, b) in params:
        rst = feat @ w + b
        h = feat
        for _ in range(k):
            h = m @ h
            rst = rst + h @ w + b
        feat = jnp.maximum(rst, 0.0)
    return feat


if __name__ == "__main__":
    # Small deterministic problem: 8 nodes, in=32, hid=32, out=16, k=2, 2 layers.
    N, IN_FEATS, HID_FEATS, OUT_FEATS, K, NUM_LAYERS = 8, 32, 32, 16, 2, 2

    key = jax.random.PRNGKey(0)
    key, akey, fkey, pkey = jax.random.split(key, 4)

    # Deterministic symmetric adjacency (no self loops).
    a = (jax.random.uniform(akey, (N, N)) > 0.5).astype(jnp.float32)
    adj = jnp.triu(a, 1)
    adj = adj + adj.T

    feat = jax.random.normal(fkey, (N, IN_FEATS), jnp.float32)

    params = init_graph_embedding_params(
        pkey, IN_FEATS, HID_FEATS, OUT_FEATS, NUM_LAYERS, method='sum', k=K)

    out = graph_embedding_forward(adj, feat, params, K, adj_is_symmetric=True)
    out = jax.block_until_ready(out)
    assert out.shape == (N, OUT_FEATS)

    # Validate bf16-MXU kernel against the f32 reference (scaled max-abs error).
    ref = graph_embedding_reference(adj, feat, params, K)
    err = jnp.max(jnp.abs(out - ref)) / (jnp.max(jnp.abs(ref)) + 1e-6)
    assert float(err) < 0.1, f"kernel/reference mismatch: scaled err={float(err)}"

    print("KERNEL_OK")
</pallas_src>

<mosaic_0001>
module attributes {stable_mosaic.version = 11 : i64} {
  func.func @graph_embedding_kernel(%arg0: memref<128x128xbf16, #tpu.memory_space<vmem>>, %arg1: memref<128x128xbf16, #tpu.memory_space<vmem>>, %arg2: memref<2x128x128xbf16, #tpu.memory_space<vmem>>, %arg3: memref<2x1x128xf32, #tpu.memory_space<vmem>>, %arg4: memref<128x128xf32, #tpu.memory_space<vmem>>) attributes {dimension_semantics = [], scalar_prefetch = 0 : i64, scratch_operands = 0 : i64, tpu.core_type = #tpu.core_type<tc>} {
    %c0 = arith.constant 0 : index
    %c0_0 = arith.constant 0 : index
    %0 = vector.load %arg0[%c0, %c0_0] : memref<128x128xbf16, #tpu.memory_space<vmem>>, vector<128x128xbf16>
    %c0_1 = arith.constant 0 : index
    %c0_2 = arith.constant 0 : index
    %1 = vector.load %arg1[%c0_1, %c0_2] : memref<128x128xbf16, #tpu.memory_space<vmem>>, vector<128x128xbf16>
    %cst = arith.constant dense<0.000000e+00> : vector<128x128xf32>
    %2 = tpu.matmul %0, %1, %cst {dimension_numbers = #tpu.dot_dimension_numbers<[1], [0], [0], [1], [0, 0, 1, 1], [], []>} : vector<128x128xbf16>, vector<128x128xbf16>, vector<128x128xf32> -> vector<128x128xf32>
    %3 = arith.truncf %2 : vector<128x128xf32> to vector<128x128xbf16>
    %c0_3 = arith.constant 0 : index
    %c0_4 = arith.constant 0 : index
    %c0_5 = arith.constant 0 : index
    %4 = vector.load %arg2[%c0_3, %c0_4, %c0_5] : memref<2x128x128xbf16, #tpu.memory_space<vmem>>, vector<1x128x128xbf16>
    %5 = vector.shape_cast %4 : vector<1x128x128xbf16> to vector<128x128xbf16>
    %cst_6 = arith.constant dense<0.000000e+00> : vector<128x128xf32>
    %6 = tpu.matmul %3, %5, %cst_6 {dimension_numbers = #tpu.dot_dimension_numbers<[1], [0], [0], [1], [0, 0, 1, 1], [], []>} : vector<128x128xbf16>, vector<128x128xbf16>, vector<128x128xf32> -> vector<128x128xf32>
    %c0_7 = arith.constant 0 : index
    %c0_8 = arith.constant 0 : index
    %c0_9 = arith.constant 0 : index
    %7 = vector.load %arg3[%c0_7, %c0_8, %c0_9] : memref<2x1x128xf32, #tpu.memory_space<vmem>>, vector<1x1x128xf32>
    %8 = vector.shape_cast %7 : vector<1x1x128xf32> to vector<1x128xf32>
    %9 = vector.broadcast %8 : vector<1x128xf32> to vector<128x128xf32>
    %10 = arith.addf %6, %9 : vector<128x128xf32>
    %cst_10 = arith.constant 0.000000e+00 : f32
    %11 = vector.broadcast %cst_10 : f32 to vector<128x128xf32>
    %12 = arith.maximumf %10, %11 : vector<128x128xf32>
    %13 = arith.truncf %12 : vector<128x128xf32> to vector<128x128xbf16>
    %cst_11 = arith.constant dense<0.000000e+00> : vector<128x128xf32>
    %14 = tpu.matmul %0, %13, %cst_11 {dimension_numbers = #tpu.dot_dimension_numbers<[1], [0], [0], [1], [0, 0, 1, 1], [], []>} : vector<128x128xbf16>, vector<128x128xbf16>, vector<128x128xf32> -> vector<128x128xf32>
    %15 = arith.truncf %14 : vector<128x128xf32> to vector<128x128xbf16>
    %c1 = arith.constant 1 : index
    %c0_12 = arith.constant 0 : index
    %c0_13 = arith.constant 0 : index
    %16 = vector.load %arg2[%c1, %c0_12, %c0_13] : memref<2x128x128xbf16, #tpu.memory_space<vmem>>, vector<1x128x128xbf16>
    %17 = vector.shape_cast %16 : vector<1x128x128xbf16> to vector<128x128xbf16>
    %cst_14 = arith.constant dense<0.000000e+00> : vector<128x128xf32>
    %18 = tpu.matmul %15, %17, %cst_14 {dimension_numbers = #tpu.dot_dimension_numbers<[1], [0], [0], [1], [0, 0, 1, 1], [], []>} : vector<128x128xbf16>, vector<128x128xbf16>, vector<128x128xf32> -> vector<128x128xf32>
    %c1_15 = arith.constant 1 : index
    %c0_16 = arith.constant 0 : index
    %c0_17 = arith.constant 0 : index
    %19 = vector.load %arg3[%c1_15, %c0_16, %c0_17] : memref<2x1x128xf32, #tpu.memory_space<vmem>>, vector<1x1x128xf32>
    %20 = vector.shape_cast %19 : vector<1x1x128xf32> to vector<1x128xf32>
    %21 = vector.broadcast %20 : vector<1x128xf32> to vector<128x128xf32>
    %22 = arith.addf %18, %21 : vector<128x128xf32>
    %cst_18 = arith.constant 0.000000e+00 : f32
    %23 = vector.broadcast %cst_18 : f32 to vector<128x128xf32>
    %24 = arith.maximumf %22, %23 : vector<128x128xf32>
    %c0_19 = arith.constant 0 : index
    %c0_20 = arith.constant 0 : index
    %25 = vector.load %arg4[%c0_19, %c0_20] : memref<128x128xf32, #tpu.memory_space<vmem>>, vector<128x128xf32>
    tpu.vector_store %arg4[%c0_19, %c0_20], %24 {strides = array<i32>} : memref<128x128xf32, #tpu.memory_space<vmem>>, vector<128x128xf32>,
    return
  }
}

</mosaic_0001>

<llo_original>
// kernel: tpu_custom_call.1
$region0: #{tpu_custom_call.1}
  #allocation0 [shape = 'u32[]', space=smem, size = 0x4, offset = 0x4, fixed_abs, tag = 'smem constant byte address 0x4 - core index']
  #allocation1 [shape = 'u32[144,128]{1,0:T(1,128)}', space=vmem, size = 0x12000, scoped, tag = 'internal scratch']
  %s0 = inlined_call_operand.hbm [shape: bf16[128,128], index: 0, kind: input, shape index: {}]
  %s1 = inlined_call_operand.hbm [shape: bf16[128,128], index: 1, kind: input, shape index: {}]
  %s2 = inlined_call_operand.hbm [shape: bf16[2,128,128], index: 2, kind: input, shape index: {}]
  %s3 = inlined_call_operand.vmem [shape: f32[2,1,128], index: 3, kind: input, shape index: {}]
  %s4 = inlined_call_operand.hbm [shape: f32[128,128], index: 4, kind: output, shape index: {}]
  %s5 = sld [smem:[#allocation0]]
  $region38: #{tpu_custom_call.1} parent=0
    _
  %s7 = ssub.s32 1, %s5
  %s8 = scalar_select 0, %s7, %s5
  $region1: #{tpu_custom_call.1} parent=0
    #allocation2 [shape = 'u8[32768]{0}', space=vmem, size = 0x8000, scoped, tag = 'input window, operand 0, single buffered']
    #allocation3 [shape = 's32[1]{0}', space=sflag, size = 0x4, scoped, tag = 'scoped memory for tpu_custom_call.1']
    #allocation4 [shape = 's32[1]{0}', space=sflag, size = 0x4, scoped, tag = 'scoped memory for tpu_custom_call.1']
    #allocation5 [shape = 'u8[32768]{0}', space=vmem, size = 0x8000, scoped, tag = 'input window, operand 1, single buffered']
    #allocation6 [shape = 's32[1]{0}', space=sflag, size = 0x4, scoped, tag = 'scoped memory for tpu_custom_call.1']
    #allocation7 [shape = 'u8[65536]{0}', space=vmem, size = 0x10000, scoped, tag = 'input window, operand 2, single buffered']
    #allocation8 [shape = 'u8[65536]{0}', space=vmem, size = 0x10000, scoped, tag = 'output window, operand 0, single buffered']
    %9 = vsyncpa [#allocation3], 0
    %10 = vsyncpa [#allocation6], 0
    %11 = vsyncpa [#allocation4], 0
    // Predicated region
    $region2: #{tpu_custom_call.1} parent=1 // pred_check
      _
    $region3: #{tpu_custom_call.1} parent=1 // pred_check_branch
      %13 = sbr.rel (0) target = $region5
    $region4: #{tpu_custom_call.1} parent=1 // pred_region
      %s15 = ssub.s32 1024, 1024
      %16 = vsyncadd [#allocation3], %s15
      %s17 = sshll.u32 [#allocation2], 4
      %s18 = int_to_ptr.vmem [resolvable:$true] %s17
      %23 = dma.hbm_to_vmem [thread:$0]  %s0, 1024, %s18, [#allocation3], 64, 64, 4
    $region5: #{tpu_custom_call.1} parent=1 // pred_fallthru
      _
    // Predicated region
    $region6: #{tpu_custom_call.1} parent=1 // pred_check
      _
    $region7: #{tpu_custom_call.1} parent=1 // pred_check_branch
      %25 = sbr.rel (0) target = $region9
    $region8: #{tpu_custom_call.1} parent=1 // pred_region
      %s27 = ssub.s32 1024, 1024
      %28 = vsyncadd [#allocation6], %s27
      %s29 = sshll.u32 [#allocation5], 4
      %s30 = int_to_ptr.vmem [resolvable:$true] %s29
      %35 = dma.hbm_to_vmem [thread:$0]  %s1, 1024, %s30, [#allocation6], 64, 64, 4
    $region9: #{tpu_custom_call.1} parent=1 // pred_fallthru
      _
    // Predicated region
    $region10: #{tpu_custom_call.1} parent=1 // pred_check
      _
    $region11: #{tpu_custom_call.1} parent=1 // pred_check_branch
      %37 = sbr.rel (0) target = $region13
    $region12: #{tpu_custom_call.1} parent=1 // pred_region
      %s39 = ssub.s32 2048, 2048
      %40 = vsyncadd [#allocation6], %s39
      %s41 = sshll.u32 [#allocation7], 4
      %s42 = int_to_ptr.vmem [resolvable:$true] %s41
      %47 = dma.hbm_to_vmem [thread:$0]  %s2, 2048, %s42, [#allocation6], 64, 64, 4
    $region13: #{tpu_custom_call.1} parent=1 // pred_fallthru
      _
    // Predicated region
    $region14: #{tpu_custom_call.1} parent=1 // pred_check
      _
    $region15: #{tpu_custom_call.1} parent=1 // pred_check_branch
      %49 = sbr.rel (0) target = $region17
    $region16: #{tpu_custom_call.1} parent=1 // pred_region
      _
    $region17: #{tpu_custom_call.1} parent=1 // pred_fallthru
      _
    // Predicated region
    $region18: #{tpu_custom_call.1} parent=1 // pred_check
      _
    $region19: #{tpu_custom_call.1} parent=1 // pred_check_branch
      %51 = sbr.rel (0) target = $region21
    $region20: #{tpu_custom_call.1} parent=1 // pred_region
      %52 = dma.done [#allocation3], 1024
    $region21: #{tpu_custom_call.1} parent=1 // pred_fallthru
      _
    // Predicated region
    $region22: #{tpu_custom_call.1} parent=1 // pred_check
      _
    $region23: #{tpu_custom_call.1} parent=1 // pred_check_branch
      %54 = sbr.rel (0) target = $region25
    $region24: #{tpu_custom_call.1} parent=1 // pred_region
      %55 = dma.done [#allocation6], 1024
    $region25: #{tpu_custom_call.1} parent=1 // pred_fallthru
      _
    // Predicated region
    $region26: #{tpu_custom_call.1} parent=1 // pred_check
      _
    $region27: #{tpu_custom_call.1} parent=1 // pred_check_branch
      %57 = sbr.rel (0) target = $region29
    $region28: #{tpu_custom_call.1} parent=1 // pred_region
      %58 = dma.done [#allocation6], 2048
    $region29: #{tpu_custom_call.1} parent=1 // pred_fallthru
      _
    %v60 = vld [vmem:[#allocation2] sm:$0xf]
    %v61 = vld [vmem:[#allocation2 + $0x4] sm:$0xf]
    %v62 = vld [vmem:[#allocation2 + $0x8] sm:$0xf]
    %v63 = vld [vmem:[#allocation2 + $0xc] sm:$0xf]
    %v64 = vld [vmem:[#allocation2 + $0x10] sm:$0xf]
    %v65 = vld [vmem:[#allocation2 + $0x14] sm:$0xf]
    %v66 = vld [vmem:[#allocation2 + $0x18] sm:$0xf]
    %v67 = vld [vmem:[#allocation2 + $0x1c] sm:$0xf]
    %v68 = vld [vmem:[#allocation2 + $0x20] sm:$0xf]
    %v69 = vld [vmem:[#allocation2 + $0x24] sm:$0xf]
    %v70 = vld [vmem:[#allocation2 + $0x28] sm:$0xf]
    %v71 = vld [vmem:[#allocation2 + $0x2c] sm:$0xf]
    %v72 = vld [vmem:[#allocation2 + $0x30] sm:$0xf]
    %v73 = vld [vmem:[#allocation2 + $0x34] sm:$0xf]
    %v74 = vld [vmem:[#allocation2 + $0x38] sm:$0xf]
    %v75 = vld [vmem:[#allocation2 + $0x3c] sm:$0xf]
    %v76 = vld [vmem:[#allocation5] sm:$0xf]
    %v77 = vld [vmem:[#allocation5 + $0x4] sm:$0xf]
    %v78 = vld [vmem:[#allocation5 + $0x8] sm:$0xf]
    %v79 = vld [vmem:[#allocation5 + $0xc] sm:$0xf]
    %v80 = vld [vmem:[#allocation5 + $0x10] sm:$0xf]
    %v81 = vld [vmem:[#allocation5 + $0x14] sm:$0xf]
    %v82 = vld [vmem:[#allocation5 + $0x18] sm:$0xf]
    %v83 = vld [vmem:[#allocation5 + $0x1c] sm:$0xf]
    %v84 = vld [vmem:[#allocation5 + $0x20] sm:$0xf]
    %v85 = vld [vmem:[#allocation5 + $0x24] sm:$0xf]
    %v86 = vld [vmem:[#allocation5 + $0x28] sm:$0xf]
    %v87 = vld [vmem:[#allocation5 + $0x2c] sm:$0xf]
    %v88 = vld [vmem:[#allocation5 + $0x30] sm:$0xf]
    %v89 = vld [vmem:[#allocation5 + $0x34] sm:$0xf]
    %v90 = vld [vmem:[#allocation5 + $0x38] sm:$0xf]
    %v91 = vld [vmem:[#allocation5 + $0x3c] sm:$0xf]
    %v108 = vunpack.c.l.b16 %v60
    %v109 = vunpack.c.l.b16 %v61
    %v110 = vunpack.c.l.b16 %v62
    %v111 = vunpack.c.l.b16 %v63
    %v112 = vunpack.c.l.b16 %v64
    %v113 = vunpack.c.l.b16 %v65
    %v114 = vunpack.c.l.b16 %v66
    %v115 = vunpack.c.l.b16 %v67
    %v116 = vunpack.c.l.b16 %v68
    %v117 = vunpack.c.l.b16 %v69
    %v118 = vunpack.c.l.b16 %v70
    %v119 = vunpack.c.l.b16 %v71
    %v120 = vunpack.c.l.b16 %v72
    %v121 = vunpack.c.l.b16 %v73
    %v122 = vunpack.c.l.b16 %v74
    %v123 = vunpack.c.l.b16 %v75
    %v124 = vpack.c.b16 %v109, %v108
    %v125 = vpack.c.b16 %v111, %v110
    %v126 = vpack.c.b16 %v113, %v112
    %v127 = vpack.c.b16 %v115, %v114
    %v128 = vpack.c.b16 %v117, %v116
    %v129 = vpack.c.b16 %v119, %v118
    %v130 = vpack.c.b16 %v121, %v120
    %v131 = vpack.c.b16 %v123, %v122
    %v156 = vunpack.c.l.b16 %v76
    %v157 = vunpack.c.l.b16 %v77
    %v158 = vunpack.c.l.b16 %v78
    %v159 = vunpack.c.l.b16 %v79
    %v160 = vunpack.c.l.b16 %v80
    %v161 = vunpack.c.l.b16 %v81
    %v162 = vunpack.c.l.b16 %v82
    %v163 = vunpack.c.l.b16 %v83
    %v164 = vunpack.c.l.b16 %v84
    %v165 = vunpack.c.l.b16 %v85
    %v166 = vunpack.c.l.b16 %v86
    %v167 = vunpack.c.l.b16 %v87
    %v168 = vunpack.c.l.b16 %v88
    %v169 = vunpack.c.l.b16 %v89
    %v170 = vunpack.c.l.b16 %v90
    %v171 = vunpack.c.l.b16 %v91
    %v172 = vpack.c.b16 %v157, %v156
    %v173 = vpack.c.b16 %v159, %v158
    %v174 = vpack.c.b16 %v161, %v160
    %v175 = vpack.c.b16 %v163, %v162
    %v176 = vpack.c.b16 %v165, %v164
    %v177 = vpack.c.b16 %v167, %v166
    %v178 = vpack.c.b16 %v169, %v168
    %v179 = vpack.c.b16 %v171, %v170
    %188 = vmatprep.subr.bf16.mxu0 0
    %189 = vmatpush1.bf16.msra.mxu0 %v172
    %190 = vmatprep.subr.bf16.mxu0 0
    %191 = vmatpush1.bf16.msra.mxu0 %v173
    %192 = vmatprep.subr.bf16.mxu0 0
    %193 = vmatpush1.bf16.msra.mxu0 %v174
    %194 = vmatprep.subr.bf16.mxu0 0
    %195 = vmatpush1.bf16.msra.mxu0 %v175
    %196 = vmatprep.subr.bf16.mxu0 0
    %197 = vmatpush1.bf16.msra.mxu0 %v176
    %198 = vmatprep.subr.bf16.mxu0 0
    %199 = vmatpush1.bf16.msra.mxu0 %v177
    %200 = vmatprep.subr.bf16.mxu0 0
    %201 = vmatpush1.bf16.msra.mxu0 %v178
    %202 = vmatprep.subr.bf16.mxu0 0
    %203 = vmatpush1.bf16.msra.mxu0 %v179
    %204 = vmatprep.subr.bf16.mxu0 0
    %205 = vmatpush1.bf16.msra.mxu0 0
    %206 = vmatprep.subr.bf16.mxu0 0
    %207 = vmatpush1.bf16.msra.mxu0 0
    %208 = vmatprep.subr.bf16.mxu0 0
    %209 = vmatpush1.bf16.msra.mxu0 0
    %210 = vmatprep.subr.bf16.mxu0 0
    %211 = vmatpush1.bf16.msra.mxu0 0
    %212 = vmatprep.subr.bf16.mxu0 0
    %213 = vmatpush1.bf16.msra.mxu0 0
    %214 = vmatprep.subr.bf16.mxu0 0
    %215 = vmatpush1.bf16.msra.mxu0 0
    %216 = vmatprep.subr.bf16.mxu0 0
    %217 = vmatpush1.bf16.msra.mxu0 0
    %218 = vmatprep.subr.bf16.mxu0 0
    %219 = vmatpush1.bf16.msra.mxu0 0
    %220 = vmatprep.mubr.bf16.mxu0 0
    %221 = vmatmul.mubr.bf16.gmra.mrb[0].mxu0 %v124
    %v222 = vpop.f32.mrb[0].mxu0
    %v223 = vadd.f32 0.0, %v222
    %v224 = vpop.f32.mrb[0].mxu0
    %v225 = vpop.f32.mrb[0].mxu0
    %v226 = vadd.f32 0.0, %v225
    %v227 = vpop.f32.mrb[0].mxu0
    %228 = vmatprep.mubr.bf16.mxu0 0
    %229 = vmatmul.mubr.bf16.gmra.mrb[0].mxu0 %v125
    %v230 = vpop.f32.mrb[0].mxu0
    %v231 = vadd.f32 0.0, %v230
    %v232 = vpop.f32.mrb[0].mxu0
    %v233 = vpop.f32.mrb[0].mxu0
    %v234 = vadd.f32 0.0, %v233
    %v235 = vpop.f32.mrb[0].mxu0
    %236 = vmatprep.mubr.bf16.mxu0 0
    %237 = vmatmul.mubr.bf16.gmra.mrb[0].mxu0 %v126
    %v238 = vpop.f32.mrb[0].mxu0
    %v239 = vadd.f32 0.0, %v238
    %v240 = vpop.f32.mrb[0].mxu0
    %v241 = vpop.f32.mrb[0].mxu0
    %v242 = vadd.f32 0.0, %v241
    %v243 = vpop.f32.mrb[0].mxu0
    %244 = vmatprep.mubr.bf16.mxu0 0
    %245 = vmatmul.mubr.bf16.gmra.mrb[0].mxu0 %v127
    %v246 = vpop.f32.mrb[0].mxu0
    %v247 = vadd.f32 0.0, %v246
    %v248 = vpop.f32.mrb[0].mxu0
    %v249 = vpop.f32.mrb[0].mxu0
    %v250 = vadd.f32 0.0, %v249
    %v251 = vpop.f32.mrb[0].mxu0
    %252 = vmatprep.mubr.bf16.mxu0 0
    %253 = vmatmul.mubr.bf16.gmra.mrb[0].mxu0 %v128
    %v254 = vpop.f32.mrb[0].mxu0
    %v255 = vadd.f32 0.0, %v254
    %v256 = vpop.f32.mrb[0].mxu0
    %v257 = vpop.f32.mrb[0].mxu0
    %v258 = vadd.f32 0.0, %v257
    %v259 = vpop.f32.mrb[0].mxu0
    %260 = vmatprep.mubr.bf16.mxu0 0
    %261 = vmatmul.mubr.bf16.gmra.mrb[0].mxu0 %v129
    %v262 = vpop.f32.mrb[0].mxu0
    %v263 = vadd.f32 0.0, %v262
    %v264 = vpop.f32.mrb[0].mxu0
    %v265 = vpop.f32.mrb[0].mxu0
    %v266 = vadd.f32 0.0, %v265
    %v267 = vpop.f32.mrb[0].mxu0
    %268 = vmatprep.mubr.bf16.mxu0 0
    %269 = vmatmul.mubr.bf16.gmra.mrb[0].mxu0 %v130
    %v270 = vpop.f32.mrb[0].mxu0
    %v271 = vadd.f32 0.0, %v270
    %v272 = vpop.f32.mrb[0].mxu0
    %v273 = vpop.f32.mrb[0].mxu0
    %v274 = vadd.f32 0.0, %v273
    %v275 = vpop.f32.mrb[0].mxu0
    %276 = vmatprep.mubr.bf16.mxu0 0
    %277 = vmatmul.mubr.bf16.gmra.mrb[0].mxu0 %v131
    %v278 = vpop.f32.mrb[0].mxu0
    %v279 = vadd.f32 0.0, %v278
    %v280 = vpop.f32.mrb[0].mxu0
    %v281 = vpop.f32.mrb[0].mxu0
    %v282 = vadd.f32 0.0, %v281
    %v283 = vpop.f32.mrb[0].mxu0
    %284 = vdwg.mxu0
    %v285 = vpack.c.bf16 %v226, %v223
    %v286 = vpack.c.bf16 %v234, %v231
    %v287 = vpack.c.bf16 %v242, %v239
    %v288 = vpack.c.bf16 %v250, %v247
    %v289 = vpack.c.bf16 %v258, %v255
    %v290 = vpack.c.bf16 %v266, %v263
    %v291 = vpack.c.bf16 %v274, %v271
    %v292 = vpack.c.bf16 %v282, %v279
    %v293 = vld [vmem:[#allocation7] sm:$0xf]
    %v294 = vld [vmem:[#allocation7 + $0x4] sm:$0xf]
    %v295 = vld [vmem:[#allocation7 + $0x8] sm:$0xf]
    %v296 = vld [vmem:[#allocation7 + $0xc] sm:$0xf]
    %v297 = vld [vmem:[#allocation7 + $0x10] sm:$0xf]
    %v298 = vld [vmem:[#allocation7 + $0x14] sm:$0xf]
    %v299 = vld [vmem:[#allocation7 + $0x18] sm:$0xf]
    %v300 = vld [vmem:[#allocation7 + $0x1c] sm:$0xf]
    %v301 = vld [vmem:[#allocation7 + $0x20] sm:$0xf]
    %v302 = vld [vmem:[#allocation7 + $0x24] sm:$0xf]
    %v303 = vld [vmem:[#allocation7 + $0x28] sm:$0xf]
    %v304 = vld [vmem:[#allocation7 + $0x2c] sm:$0xf]
    %v305 = vld [vmem:[#allocation7 + $0x30] sm:$0xf]
    %v306 = vld [vmem:[#allocation7 + $0x34] sm:$0xf]
    %v307 = vld [vmem:[#allocation7 + $0x38] sm:$0xf]
    %v308 = vld [vmem:[#allocation7 + $0x3c] sm:$0xf]
    %v309 = vld [vmem:[%s3] sm:$0x1]
    %v311 = vlaneseq
    %v312 = vshrl.u32 %v311, 7
    %v313 = vsub.s32 0, %v312
    %v314 = vrot.slane %v309, %v313
    %v332 = vunpack.c.l.b16 %v293
    %v333 = vunpack.c.l.b16 %v294
    %v334 = vunpack.c.l.b16 %v295
    %v335 = vunpack.c.l.b16 %v296
    %v336 = vunpack.c.l.b16 %v297
    %v337 = vunpack.c.l.b16 %v298
    %v338 = vunpack.c.l.b16 %v299
    %v339 = vunpack.c.l.b16 %v300
    %v340 = vunpack.c.l.b16 %v301
    %v341 = vunpack.c.l.b16 %v302
    %v342 = vunpack.c.l.b16 %v303
    %v343 = vunpack.c.l.b16 %v304
    %v344 = vunpack.c.l.b16 %v305
    %v345 = vunpack.c.l.b16 %v306
    %v346 = vunpack.c.l.b16 %v307
    %v347 = vunpack.c.l.b16 %v308
    %v348 = vpack.c.b16 %v333, %v332
    %v349 = vpack.c.b16 %v335, %v334
    %v350 = vpack.c.b16 %v337, %v336
    %v351 = vpack.c.b16 %v339, %v338
    %v352 = vpack.c.b16 %v341, %v340
    %v353 = vpack.c.b16 %v343, %v342
    %v354 = vpack.c.b16 %v345, %v344
    %v355 = vpack.c.b16 %v347, %v346
    %364 = vmatprep.subr.bf16.mxu0 0
    %365 = vmatpush1.bf16.msra.mxu0 %v348
    %366 = vmatprep.subr.bf16.mxu0 0
    %367 = vmatpush1.bf16.msra.mxu0 %v349
    %368 = vmatprep.subr.bf16.mxu0 0
    %369 = vmatpush1.bf16.msra.mxu0 %v350
    %370 = vmatprep.subr.bf16.mxu0 0
    %371 = vmatpush1.bf16.msra.mxu0 %v351
    %372 = vmatprep.subr.bf16.mxu0 0
    %373 = vmatpush1.bf16.msra.mxu0 %v352
    %374 = vmatprep.subr.bf16.mxu0 0
    %375 = vmatpush1.bf16.msra.mxu0 %v353
    %376 = vmatprep.subr.bf16.mxu0 0
    %377 = vmatpush1.bf16.msra.mxu0 %v354
    %378 = vmatprep.subr.bf16.mxu0 0
    %379 = vmatpush1.bf16.msra.mxu0 %v355
    %380 = vmatprep.subr.bf16.mxu0 0
    %381 = vmatpush1.bf16.msra.mxu0 0
    %382 = vmatprep.subr.bf16.mxu0 0
    %383 = vmatpush1.bf16.msra.mxu0 0
    %384 = vmatprep.subr.bf16.mxu0 0
    %385 = vmatpush1.bf16.msra.mxu0 0
    %386 = vmatprep.subr.bf16.mxu0 0
    %387 = vmatpush1.bf16.msra.mxu0 0
    %388 = vmatprep.subr.bf16.mxu0 0
    %389 = vmatpush1.bf16.msra.mxu0 0
    %390 = vmatprep.subr.bf16.mxu0 0
    %391 = vmatpush1.bf16.msra.mxu0 0
    %392 = vmatprep.subr.bf16.mxu0 0
    %393 = vmatpush1.bf16.msra.mxu0 0
    %394 = vmatprep.subr.bf16.mxu0 0
    %395 = vmatpush1.bf16.msra.mxu0 0
    %396 = vmatprep.mubr.bf16.mxu0 0
    %397 = vmatmul.mubr.bf16.gmra.mrb[0].mxu0 %v285
    %v398 = vpop.f32.mrb[0].mxu0
    %v399 = vadd.f32 %v314, %v398
    %v400 = vpop.f32.mrb[0].mxu0
    %v401 = vpop.f32.mrb[0].mxu0
    %v402 = vadd.f32 %v314, %v401
    %v403 = vpop.f32.mrb[0].mxu0
    %404 = vmatprep.mubr.bf16.mxu0 0
    %405 = vmatmul.mubr.bf16.gmra.mrb[0].mxu0 %v286
    %v406 = vpop.f32.mrb[0].mxu0
    %v407 = vadd.f32 %v314, %v406
    %v408 = vpop.f32.mrb[0].mxu0
    %v409 = vpop.f32.mrb[0].mxu0
    %v410 = vadd.f32 %v314, %v409
    %v411 = vpop.f32.mrb[0].mxu0
    %412 = vmatprep.mubr.bf16.mxu0 0
    %413 = vmatmul.mubr.bf16.gmra.mrb[0].mxu0 %v287
    %v414 = vpop.f32.mrb[0].mxu0
    %v415 = vadd.f32 %v314, %v414
    %v416 = vpop.f32.mrb[0].mxu0
    %v417 = vpop.f32.mrb[0].mxu0
    %v418 = vadd.f32 %v314, %v417
    %v419 = vpop.f32.mrb[0].mxu0
    %420 = vmatprep.mubr.bf16.mxu0 0
    %421 = vmatmul.mubr.bf16.gmra.mrb[0].mxu0 %v288
    %v422 = vpop.f32.mrb[0].mxu0
    %v423 = vadd.f32 %v314, %v422
    %v424 = vpop.f32.mrb[0].mxu0
    %v425 = vpop.f32.mrb[0].mxu0
    %v426 = vadd.f32 %v314, %v425
    %v427 = vpop.f32.mrb[0].mxu0
    %428 = vmatprep.mubr.bf16.mxu0 0
    %429 = vmatmul.mubr.bf16.gmra.mrb[0].mxu0 %v289
    %v430 = vpop.f32.mrb[0].mxu0
    %v431 = vadd.f32 %v314, %v430
    %v432 = vpop.f32.mrb[0].mxu0
    %v433 = vpop.f32.mrb[0].mxu0
    %v434 = vadd.f32 %v314, %v433
    %v435 = vpop.f32.mrb[0].mxu0
    %436 = vmatprep.mubr.bf16.mxu0 0
    %437 = vmatmul.mubr.bf16.gmra.mrb[0].mxu0 %v290
    %v438 = vpop.f32.mrb[0].mxu0
    %v439 = vadd.f32 %v314, %v438
    %v440 = vpop.f32.mrb[0].mxu0
    %v441 = vpop.f32.mrb[0].mxu0
    %v442 = vadd.f32 %v314, %v441
    %v443 = vpop.f32.mrb[0].mxu0
    %444 = vmatprep.mubr.bf16.mxu0 0
    %445 = vmatmul.mubr.bf16.gmra.mrb[0].mxu0 %v291
    %v446 = vpop.f32.mrb[0].mxu0
    %v447 = vadd.f32 %v314, %v446
    %v448 = vpop.f32.mrb[0].mxu0
    %v449 = vpop.f32.mrb[0].mxu0
    %v450 = vadd.f32 %v314, %v449
    %v451 = vpop.f32.mrb[0].mxu0
    %452 = vmatprep.mubr.bf16.mxu0 0
    %453 = vmatmul.mubr.bf16.gmra.mrb[0].mxu0 %v292
    %v454 = vpop.f32.mrb[0].mxu0
    %v455 = vadd.f32 %v314, %v454
    %v456 = vpop.f32.mrb[0].mxu0
    %v457 = vpop.f32.mrb[0].mxu0
    %v458 = vadd.f32 %v314, %v457
    %v459 = vpop.f32.mrb[0].mxu0
    %460 = vdwg.mxu0
    %v461 = vmax.f32 %v399, 0.0
    %v462 = vmax.f32 %v402, 0.0
    %v463 = vmax.f32 %v407, 0.0
    %v464 = vmax.f32 %v410, 0.0
    %v465 = vmax.f32 %v415, 0.0
    %v466 = vmax.f32 %v418, 0.0
    %v467 = vmax.f32 %v423, 0.0
    %v468 = vmax.f32 %v426, 0.0
    %v469 = vmax.f32 %v431, 0.0
    %v470 = vmax.f32 %v434, 0.0
    %v471 = vmax.f32 %v439, 0.0
    %v472 = vmax.f32 %v442, 0.0
    %v473 = vmax.f32 %v447, 0.0
    %v474 = vmax.f32 %v450, 0.0
    %v475 = vmax.f32 %v455, 0.0
    %v476 = vmax.f32 %v458, 0.0
    %v477 = vpack.c.bf16 %v462, %v461
    %v478 = vpack.c.bf16 %v464, %v463
    %v479 = vpack.c.bf16 %v466, %v465
    %v480 = vpack.c.bf16 %v468, %v467
    %v481 = vpack.c.bf16 %v470, %v469
    %v482 = vpack.c.bf16 %v472, %v471
    %v483 = vpack.c.bf16 %v474, %v473
    %v484 = vpack.c.bf16 %v476, %v475
    %485 = vmatprep.subr.bf16.mxu0 0
    %486 = vmatpush1.bf16.msra.mxu0 %v477
    %487 = vmatprep.subr.bf16.mxu0 0
    %488 = vmatpush1.bf16.msra.mxu0 %v478
    %489 = vmatprep.subr.bf16.mxu0 0
    %490 = vmatpush1.bf16.msra.mxu0 %v479
    %491 = vmatprep.subr.bf16.mxu0 0
    %492 = vmatpush1.bf16.msra.mxu0 %v480
    %493 = vmatprep.subr.bf16.mxu0 0
    %494 = vmatpush1.bf16.msra.mxu0 %v481
    %495 = vmatprep.subr.bf16.mxu0 0
    %496 = vmatpush1.bf16.msra.mxu0 %v482
    %497 = vmatprep.subr.bf16.mxu0 0
    %498 = vmatpush1.bf16.msra.mxu0 %v483
    %499 = vmatprep.subr.bf16.mxu0 0
    %500 = vmatpush1.bf16.msra.mxu0 %v484
    %501 = vmatprep.subr.bf16.mxu0 0
    %502 = vmatpush1.bf16.msra.mxu0 0
    %503 = vmatprep.subr.bf16.mxu0 0
    %504 = vmatpush1.bf16.msra.mxu0 0
    %505 = vmatprep.subr.bf16.mxu0 0
    %506 = vmatpush1.bf16.msra.mxu0 0
    %507 = vmatprep.subr.bf16.mxu0 0
    %508 = vmatpush1.bf16.msra.mxu0 0
    %509 = vmatprep.subr.bf16.mxu0 0
    %510 = vmatpush1.bf16.msra.mxu0 0
    %511 = vmatprep.subr.bf16.mxu0 0
    %512 = vmatpush1.bf16.msra.mxu0 0
    %513 = vmatprep.subr.bf16.mxu0 0
    %514 = vmatpush1.bf16.msra.mxu0 0
    %515 = vmatprep.subr.bf16.mxu0 0
    %516 = vmatpush1.bf16.msra.mxu0 0
    %517 = vmatprep.mubr.bf16.mxu0 0
    %518 = vmatmul.mubr.bf16.gmra.mrb[0].mxu0 %v124
    %v519 = vpop.f32.mrb[0].mxu0
    %v520 = vadd.f32 0.0, %v519
    %v521 = vpop.f32.mrb[0].mxu0
    %v522 = vpop.f32.mrb[0].mxu0
    %v523 = vadd.f32 0.0, %v522
    %v524 = vpop.f32.mrb[0].mxu0
    %525 = vmatprep.mubr.bf16.mxu0 0
    %526 = vmatmul.mubr.bf16.gmra.mrb[0].mxu0 %v125
    %v527 = vpop.f32.mrb[0].mxu0
    %v528 = vadd.f32 0.0, %v527
    %v529 = vpop.f32.mrb[0].mxu0
    %v530 = vpop.f32.mrb[0].mxu0
    %v531 = vadd.f32 0.0, %v530
    %v532 = vpop.f32.mrb[0].mxu0
    %533 = vmatprep.mubr.bf16.mxu0 0
    %534 = vmatmul.mubr.bf16.gmra.mrb[0].mxu0 %v126
    %v535 = vpop.f32.mrb[0].mxu0
    %v536 = vadd.f32 0.0, %v535
    %v537 = vpop.f32.mrb[0].mxu0
    %v538 = vpop.f32.mrb[0].mxu0
    %v539 = vadd.f32 0.0, %v538
    %v540 = vpop.f32.mrb[0].mxu0
    %541 = vmatprep.mubr.bf16.mxu0 0
    %542 = vmatmul.mubr.bf16.gmra.mrb[0].mxu0 %v127
    %v543 = vpop.f32.mrb[0].mxu0
    %v544 = vadd.f32 0.0, %v543
    %v545 = vpop.f32.mrb[0].mxu0
    %v546 = vpop.f32.mrb[0].mxu0
    %v547 = vadd.f32 0.0, %v546
    %v548 = vpop.f32.mrb[0].mxu0
    %549 = vmatprep.mubr.bf16.mxu0 0
    %550 = vmatmul.mubr.bf16.gmra.mrb[0].mxu0 %v128
    %v551 = vpop.f32.mrb[0].mxu0
    %v552 = vadd.f32 0.0, %v551
    %v553 = vpop.f32.mrb[0].mxu0
    %v554 = vpop.f32.mrb[0].mxu0
    %v555 = vadd.f32 0.0, %v554
    %v556 = vpop.f32.mrb[0].mxu0
    %557 = vmatprep.mubr.bf16.mxu0 0
    %558 = vmatmul.mubr.bf16.gmra.mrb[0].mxu0 %v129
    %v559 = vpop.f32.mrb[0].mxu0
    %v560 = vadd.f32 0.0, %v559
    %v561 = vpop.f32.mrb[0].mxu0
    %v562 = vpop.f32.mrb[0].mxu0
    %v563 = vadd.f32 0.0, %v562
    %v564 = vpop.f32.mrb[0].mxu0
    %565 = vmatprep.mubr.bf16.mxu0 0
    %566 = vmatmul.mubr.bf16.gmra.mrb[0].mxu0 %v130
    %v567 = vpop.f32.mrb[0].mxu0
    %v568 = vadd.f32 0.0, %v567
    %v569 = vpop.f32.mrb[0].mxu0
    %v570 = vpop.f32.mrb[0].mxu0
    %v571 = vadd.f32 0.0, %v570
    %v572 = vpop.f32.mrb[0].mxu0
    %573 = vmatprep.mubr.bf16.mxu0 0
    %574 = vmatmul.mubr.bf16.gmra.mrb[0].mxu0 %v131
    %v575 = vpop.f32.mrb[0].mxu0
    %v576 = vadd.f32 0.0, %v575
    %v577 = vpop.f32.mrb[0].mxu0
    %v578 = vpop.f32.mrb[0].mxu0
    %v579 = vadd.f32 0.0, %v578
    %v580 = vpop.f32.mrb[0].mxu0
    %581 = vdwg.mxu0
    %v582 = vpack.c.bf16 %v523, %v520
    %v583 = vpack.c.bf16 %v531, %v528
    %v584 = vpack.c.bf16 %v539, %v536
    %v585 = vpack.c.bf16 %v547, %v544
    %v586 = vpack.c.bf16 %v555, %v552
    %v587 = vpack.c.bf16 %v563, %v560
    %v588 = vpack.c.bf16 %v571, %v568
    %v589 = vpack.c.bf16 %v579, %v576
    %s590 = scalar_lea.vmem [#allocation7], 64
    %v591 = vld [vmem:[%s590] sm:$0xf]
    %v592 = vld [vmem:[%s590 + $0x4] sm:$0xf]
    %v593 = vld [vmem:[%s590 + $0x8] sm:$0xf]
    %v594 = vld [vmem:[%s590 + $0xc] sm:$0xf]
    %v595 = vld [vmem:[%s590 + $0x10] sm:$0xf]
    %v596 = vld [vmem:[%s590 + $0x14] sm:$0xf]
    %v597 = vld [vmem:[%s590 + $0x18] sm:$0xf]
    %v598 = vld [vmem:[%s590 + $0x1c] sm:$0xf]
    %v599 = vld [vmem:[%s590 + $0x20] sm:$0xf]
    %v600 = vld [vmem:[%s590 + $0x24] sm:$0xf]
    %v601 = vld [vmem:[%s590 + $0x28] sm:$0xf]
    %v602 = vld [vmem:[%s590 + $0x2c] sm:$0xf]
    %v603 = vld [vmem:[%s590 + $0x30] sm:$0xf]
    %v604 = vld [vmem:[%s590 + $0x34] sm:$0xf]
    %v605 = vld [vmem:[%s590 + $0x38] sm:$0xf]
    %v606 = vld [vmem:[%s590 + $0x3c] sm:$0xf]
    %s607 = scalar_lea.vmem %s3, 1
    %v608 = vld [vmem:[%s607] sm:$0x1]
    %v610 = vlaneseq
    %v611 = vshrl.u32 %v610, 7
    %v612 = vsub.s32 0, %v611
    %v613 = vrot.slane %v608, %v612
    %v631 = vunpack.c.l.b16 %v591
    %v632 = vunpack.c.l.b16 %v592
    %v633 = vunpack.c.l.b16 %v593
    %v634 = vunpack.c.l.b16 %v594
    %v635 = vunpack.c.l.b16 %v595
    %v636 = vunpack.c.l.b16 %v596
    %v637 = vunpack.c.l.b16 %v597
    %v638 = vunpack.c.l.b16 %v598
    %v639 = vunpack.c.l.b16 %v599
    %v640 = vunpack.c.l.b16 %v600
    %v641 = vunpack.c.l.b16 %v601
    %v642 = vunpack.c.l.b16 %v602
    %v643 = vunpack.c.l.b16 %v603
    %v644 = vunpack.c.l.b16 %v604
    %v645 = vunpack.c.l.b16 %v605
    %v646 = vunpack.c.l.b16 %v606
    %v647 = vpack.c.b16 %v632, %v631
    %v648 = vpack.c.b16 %v634, %v633
    %v649 = vpack.c.b16 %v636, %v635
    %v650 = vpack.c.b16 %v638, %v637
    %v651 = vpack.c.b16 %v640, %v639
    %v652 = vpack.c.b16 %v642, %v641
    %v653 = vpack.c.b16 %v644, %v643
    %v654 = vpack.c.b16 %v646, %v645
    %663 = vmatprep.subr.bf16.mxu0 0
    %664 = vmatpush1.bf16.msra.mxu0 %v647
    %665 = vmatprep.subr.bf16.mxu0 0
    %666 = vmatpush1.bf16.msra.mxu0 %v648
    %667 = vmatprep.subr.bf16.mxu0 0
    %668 = vmatpush1.bf16.msra.mxu0 %v649
    %669 = vmatprep.subr.bf16.mxu0 0
    %670 = vmatpush1.bf16.msra.mxu0 %v650
    %671 = vmatprep.subr.bf16.mxu0 0
    %672 = vmatpush1.bf16.msra.mxu0 %v651
    %673 = vmatprep.subr.bf16.mxu0 0
    %674 = vmatpush1.bf16.msra.mxu0 %v652
    %675 = vmatprep.subr.bf16.mxu0 0
    %676 = vmatpush1.bf16.msra.mxu0 %v653
    %677 = vmatprep.subr.bf16.mxu0 0
    %678 = vmatpush1.bf16.msra.mxu0 %v654
    %679 = vmatprep.subr.bf16.mxu0 0
    %680 = vmatpush1.bf16.msra.mxu0 0
    %681 = vmatprep.subr.bf16.mxu0 0
    %682 = vmatpush1.bf16.msra.mxu0 0
    %683 = vmatprep.subr.bf16.mxu0 0
    %684 = vmatpush1.bf16.msra.mxu0 0
    %685 = vmatprep.subr.bf16.mxu0 0
    %686 = vmatpush1.bf16.msra.mxu0 0
    %687 = vmatprep.subr.bf16.mxu0 0
    %688 = vmatpush1.bf16.msra.mxu0 0
    %689 = vmatprep.subr.bf16.mxu0 0
    %690 = vmatpush1.bf16.msra.mxu0 0
    %691 = vmatprep.subr.bf16.mxu0 0
    %692 = vmatpush1.bf16.msra.mxu0 0
    %693 = vmatprep.subr.bf16.mxu0 0
    %694 = vmatpush1.bf16.msra.mxu0 0
    %695 = vmatprep.mubr.bf16.mxu0 0
    %696 = vmatmul.mubr.bf16.gmra.mrb[0].mxu0 %v582
    %v697 = vpop.f32.mrb[0].mxu0
    %v698 = vadd.f32 %v613, %v697
    %v699 = vpop.f32.mrb[0].mxu0
    %v700 = vpop.f32.mrb[0].mxu0
    %v701 = vadd.f32 %v613, %v700
    %v702 = vpop.f32.mrb[0].mxu0
    %703 = vmatprep.mubr.bf16.mxu0 0
    %704 = vmatmul.mubr.bf16.gmra.mrb[0].mxu0 %v583
    %v705 = vpop.f32.mrb[0].mxu0
    %v706 = vadd.f32 %v613, %v705
    %v707 = vpop.f32.mrb[0].mxu0
    %v708 = vpop.f32.mrb[0].mxu0
    %v709 = vadd.f32 %v613, %v708
    %v710 = vpop.f32.mrb[0].mxu0
    %711 = vmatprep.mubr.bf16.mxu0 0
    %712 = vmatmul.mubr.bf16.gmra.mrb[0].mxu0 %v584
    %v713 = vpop.f32.mrb[0].mxu0
    %v714 = vadd.f32 %v613, %v713
    %v715 = vpop.f32.mrb[0].mxu0
    %v716 = vpop.f32.mrb[0].mxu0
    %v717 = vadd.f32 %v613, %v716
    %v718 = vpop.f32.mrb[0].mxu0
    %719 = vmatprep.mubr.bf16.mxu0 0
    %720 = vmatmul.mubr.bf16.gmra.mrb[0].mxu0 %v585
    %v721 = vpop.f32.mrb[0].mxu0
    %v722 = vadd.f32 %v613, %v721
    %v723 = vpop.f32.mrb[0].mxu0
    %v724 = vpop.f32.mrb[0].mxu0
    %v725 = vadd.f32 %v613, %v724
    %v726 = vpop.f32.mrb[0].mxu0
    %727 = vmatprep.mubr.bf16.mxu0 0
    %728 = vmatmul.mubr.bf16.gmra.mrb[0].mxu0 %v586
    %v729 = vpop.f32.mrb[0].mxu0
    %v730 = vadd.f32 %v613, %v729
    %v731 = vpop.f32.mrb[0].mxu0
    %v732 = vpop.f32.mrb[0].mxu0
    %v733 = vadd.f32 %v613, %v732
    %v734 = vpop.f32.mrb[0].mxu0
    %735 = vmatprep.mubr.bf16.mxu0 0
    %736 = vmatmul.mubr.bf16.gmra.mrb[0].mxu0 %v587
    %v737 = vpop.f32.mrb[0].mxu0
    %v738 = vadd.f32 %v613, %v737
    %v739 = vpop.f32.mrb[0].mxu0
    %v740 = vpop.f32.mrb[0].mxu0
    %v741 = vadd.f32 %v613, %v740
    %v742 = vpop.f32.mrb[0].mxu0
    %743 = vmatprep.mubr.bf16.mxu0 0
    %744 = vmatmul.mubr.bf16.gmra.mrb[0].mxu0 %v588
    %v745 = vpop.f32.mrb[0].mxu0
    %v746 = vadd.f32 %v613, %v745
    %v747 = vpop.f32.mrb[0].mxu0
    %v748 = vpop.f32.mrb[0].mxu0
    %v749 = vadd.f32 %v613, %v748
    %v750 = vpop.f32.mrb[0].mxu0
    %751 = vmatprep.mubr.bf16.mxu0 0
    %752 = vmatmul.mubr.bf16.gmra.mrb[0].mxu0 %v589
    %v753 = vpop.f32.mrb[0].mxu0
    %v754 = vadd.f32 %v613, %v753
    %v755 = vpop.f32.mrb[0].mxu0
    %v756 = vpop.f32.mrb[0].mxu0
    %v757 = vadd.f32 %v613, %v756
    %v758 = vpop.f32.mrb[0].mxu0
    %759 = vdwg.mxu0
    %v760 = vmax.f32 %v698, 0.0
    %v761 = vmax.f32 %v701, 0.0
    %v762 = vmax.f32 %v706, 0.0
    %v763 = vmax.f32 %v709, 0.0
    %v764 = vmax.f32 %v714, 0.0
    %v765 = vmax.f32 %v717, 0.0
    %v766 = vmax.f32 %v722, 0.0
    %v767 = vmax.f32 %v725, 0.0
    %v768 = vmax.f32 %v730, 0.0
    %v769 = vmax.f32 %v733, 0.0
    %v770 = vmax.f32 %v738, 0.0
    %v771 = vmax.f32 %v741, 0.0
    %v772 = vmax.f32 %v746, 0.0
    %v773 = vmax.f32 %v749, 0.0
    %v774 = vmax.f32 %v754, 0.0
    %v775 = vmax.f32 %v757, 0.0
    %776 = vst [vmem:[#allocation8] sm:$0xff] %v760
    %777 = vst [vmem:[#allocation8 + $0x8] sm:$0xff] %v761
    %778 = vst [vmem:[#allocation8 + $0x10] sm:$0xff] %v762
    %779 = vst [vmem:[#allocation8 + $0x18] sm:$0xff] %v763
    %780 = vst [vmem:[#allocation8 + $0x20] sm:$0xff] %v764
    %781 = vst [vmem:[#allocation8 + $0x28] sm:$0xff] %v765
    %782 = vst [vmem:[#allocation8 + $0x30] sm:$0xff] %v766
    %783 = vst [vmem:[#allocation8 + $0x38] sm:$0xff] %v767
    %784 = vst [vmem:[#allocation8 + $0x40] sm:$0xff] %v768
    %785 = vst [vmem:[#allocation8 + $0x48] sm:$0xff] %v769
    %786 = vst [vmem:[#allocation8 + $0x50] sm:$0xff] %v770
    %787 = vst [vmem:[#allocation8 + $0x58] sm:$0xff] %v771
    %788 = vst [vmem:[#allocation8 + $0x60] sm:$0xff] %v772
    %789 = vst [vmem:[#allocation8 + $0x68] sm:$0xff] %v773
    %790 = vst [vmem:[#allocation8 + $0x70] sm:$0xff] %v774
    %791 = vst [vmem:[#allocation8 + $0x78] sm:$0xff] %v775
    // Predicated region
    $region30: #{tpu_custom_call.1} parent=1 // pred_check
      _
    $region31: #{tpu_custom_call.1} parent=1 // pred_check_branch
      %793 = sbr.rel (0) target = $region33
    $region32: #{tpu_custom_call.1} parent=1 // pred_region
      %s795 = ssub.s32 2048, 2048
      %796 = vsyncadd [#allocation4], %s795
      %s797 = sshll.u32 [#allocation8], 4
      %s798 = int_to_ptr.vmem [resolvable:$true] %s797
      %803 = dma.vmem_to_hbm [thread:$0]  %s798, 2048, %s4, [#allocation4], 128, 128, 8
    $region33: #{tpu_custom_call.1} parent=1 // pred_fallthru
      _
    // Predicated region
    $region34: #{tpu_custom_call.1} parent=1 // pred_check
      _
    $region35: #{tpu_custom_call.1} parent=1 // pred_check_branch
      %805 = sbr.rel (0) target = $region37
    $region36: #{tpu_custom_call.1} parent=1 // pred_region
      %806 = dma.done [#allocation4], 2048
    $region37: #{tpu_custom_call.1} parent=1 // pred_fallthru
      _
    %807 = vsyncpa [#allocation3], 1
    %808 = vsyncpa [#allocation6], 1
    %809 = vsyncpa [#allocation4], 1

</llo_original>
